<compile_context>
chip_gen: v7x
topology: tpu7x:2x2x1
jax: 0.10.0
libtpu: 0.0.40
codegen_flags: <defaults>
</compile_context>

<pallas_src>
import functools

import jax
import jax.numpy as jnp
from jax.experimental import pallas as pl
from jax.experimental.pallas import tpu as pltpu


# Conservative VMEM budget for the double-buffered streaming tiles so the same
# tiling fits v5e/v6e (128 MiB) and v7x (64 MiB physical per TensorCore).
_VMEM_TILE_BUDGET = 32 * 1024 * 1024
_VMEM_LIMIT_BYTES = 64 * 1024 * 1024


def _pick_row_tile(rows: int, hidden: int, itemsize: int, n_streams: int) -> int:
    """Largest row tile that fits the VMEM budget.

    Budget model: `n_streams` large arrays are streamed through VMEM, each
    double-buffered by the BlockSpec pipeline, plus ~3 fp32 full-tile
    temporaries inside the kernel. Tile is rounded to the sublane packing of
    the dtype (8 rows f32, 16 bf16, 32 int8) and capped so the grid keeps a
    few steps (pipelining + both v7x TensorCores).
    """
    sub = max(8, 32 // itemsize)
    if rows <= sub:
        return rows  # single full block (full-extent dims are always legal)
    per_row = n_streams * 2 * hidden * itemsize + 3 * hidden * 4
    tm = min(1024, max(sub, _VMEM_TILE_BUDGET // per_row), rows)
    tm = max(sub, (tm // sub) * sub)
    # Prefer >= 4 grid steps so the pipeline / megacore sharding has work.
    while tm > sub and pl.cdiv(rows, tm) < 4:
        tm = max(sub, ((tm // 2) // sub) * sub)
    return tm


# ---------------------------------------------------------------------------
# Kernels
# ---------------------------------------------------------------------------
def _rms_kernel(x_ref, w_ref, o_ref, *, eps):
    """Plain RMSNorm, HF bit-parity: variance in fp32, rescale, round to the
    input dtype, then multiply by the fp32 weight."""
    x = x_ref[...]                                       # (tm, H) input dtype
    x_f32 = x.astype(jnp.float32)
    var = jnp.mean(x_f32 * x_f32, axis=-1, keepdims=True)
    inv = jax.lax.rsqrt(var + eps)
    # HF: x * rsqrt(var+eps) -> cast to input dtype -> * fp32 weight.
    y = (x_f32 * inv).astype(x.dtype).astype(jnp.float32)
    o_ref[...] = (w_ref[...] * y).astype(o_ref.dtype)    # weight is already fp32


def _add_rms_kernel(x_ref, r_ref, w_ref, o_ref, res_out_ref, *, eps):
    """Fused residual-add + RMSNorm (all math in fp32, as in the reference)."""
    s = x_ref[...].astype(jnp.float32) + r_ref[...].astype(jnp.float32)
    var = jnp.mean(s * s, axis=-1, keepdims=True)
    inv = jax.lax.rsqrt(var + eps)
    o_ref[...] = (s * inv * w_ref[...]).astype(o_ref.dtype)
    res_out_ref[...] = s.astype(res_out_ref.dtype)


# ---------------------------------------------------------------------------
# Wrapper (module-equivalent)
# ---------------------------------------------------------------------------
class RMSNorm:
    def __init__(self, hidden_size: int, eps: float = 1e-6):
        self.hidden_size = hidden_size
        self.eps = eps
        # deterministic init, same as nn.Parameter(torch.ones(hidden_size))
        self.weight = jnp.ones((hidden_size,), dtype=jnp.float32)

    # -- plain RMSNorm ------------------------------------------------------
    def rms_forward(self, x):
        orig_shape = x.shape
        H = self.hidden_size
        assert orig_shape[-1] == H
        x2d = x.reshape(-1, H)
        rows = x2d.shape[0]
        itemsize = jnp.dtype(x.dtype).itemsize
        tm = _pick_row_tile(rows, H, itemsize, n_streams=2)   # x in, out
        grid = pl.cdiv(rows, tm)
        w2d = self.weight.reshape(1, H)

        nbytes = rows * H * itemsize
        cost = pl.CostEstimate(
            flops=4 * rows * H,
            transcendentals=rows,
            bytes_accessed=2 * nbytes + H * 4,
        )

        out = pl.pallas_call(
            functools.partial(_rms_kernel, eps=self.eps),
            out_shape=jax.ShapeDtypeStruct((rows, H), x.dtype),
            grid_spec=pltpu.PrefetchScalarGridSpec(
                num_scalar_prefetch=0,
                grid=(grid,),
                in_specs=[
                    pl.BlockSpec((tm, H), lambda i: (i, 0)),
                    pl.BlockSpec((1, H), lambda i: (0, 0)),
                ],
                out_specs=pl.BlockSpec((tm, H), lambda i: (i, 0)),
            ),
            compiler_params=pltpu.CompilerParams(
                dimension_semantics=("parallel",),
                vmem_limit_bytes=_VMEM_LIMIT_BYTES,
            ),
            cost_estimate=cost,
        )(x2d, w2d)
        return out.reshape(orig_shape)

    # -- residual-add + RMSNorm --------------------------------------------
    def add_rms_forward(self, x, residual):
        orig_shape = x.shape
        H = self.hidden_size
        assert orig_shape[-1] == H
        # reference slices the residual along dim 0 if its leading dim is larger
        if residual.shape[0] != x.shape[0]:
            residual = residual[: x.shape[0]]
        x2d = x.reshape(-1, H)
        r2d = residual.reshape(-1, H)
        rows = x2d.shape[0]
        itemsize = jnp.dtype(x.dtype).itemsize
        tm = _pick_row_tile(rows, H, itemsize, n_streams=4)   # x, r, out, res_out
        grid = pl.cdiv(rows, tm)
        w2d = self.weight.reshape(1, H)

        nbytes = rows * H * itemsize
        r_nbytes = rows * H * jnp.dtype(r2d.dtype).itemsize
        cost = pl.CostEstimate(
            flops=5 * rows * H,
            transcendentals=rows,
            bytes_accessed=3 * nbytes + r_nbytes + H * 4,
        )

        # residual is dead after the add -> alias it to residual_out when legal.
        aliases = {1: 1} if r2d.dtype == x.dtype else {}

        out, res_out = pl.pallas_call(
            functools.partial(_add_rms_kernel, eps=self.eps),
            out_shape=(
                jax.ShapeDtypeStruct((rows, H), x.dtype),
                jax.ShapeDtypeStruct((rows, H), x.dtype),
            ),
            grid_spec=pltpu.PrefetchScalarGridSpec(
                num_scalar_prefetch=0,
                grid=(grid,),
                in_specs=[
                    pl.BlockSpec((tm, H), lambda i: (i, 0)),
                    pl.BlockSpec((tm, H), lambda i: (i, 0)),
                    pl.BlockSpec((1, H), lambda i: (0, 0)),
                ],
                out_specs=[
                    pl.BlockSpec((tm, H), lambda i: (i, 0)),
                    pl.BlockSpec((tm, H), lambda i: (i, 0)),
                ],
            ),
            compiler_params=pltpu.CompilerParams(
                dimension_semantics=("parallel",),
                vmem_limit_bytes=_VMEM_LIMIT_BYTES,
            ),
            cost_estimate=cost,
            input_output_aliases=aliases,
        )(x2d, r2d, w2d)
        return out.reshape(orig_shape), res_out.reshape(orig_shape)

    def __call__(self, x, residual=None):
        if residual is None:
            return self.rms_forward(x)
        return self.add_rms_forward(x, residual)


# ---------------------------------------------------------------------------
# Pure-JAX references for verification
# ---------------------------------------------------------------------------
def _ref_rms(x, w, eps):
    xf = x.astype(jnp.float32)
    var = jnp.mean(xf * xf, axis=-1, keepdims=True)
    y = (xf * jax.lax.rsqrt(var + eps)).astype(x.dtype)
    return (w.astype(jnp.float32) * y.astype(jnp.float32)).astype(x.dtype)


def _ref_add_rms(x, r, w, eps):
    s = x.astype(jnp.float32) + r.astype(jnp.float32)
    var = jnp.mean(s * s, axis=-1, keepdims=True)
    out = (s * jax.lax.rsqrt(var + eps) * w.astype(jnp.float32)).astype(x.dtype)
    return out, s.astype(x.dtype)


if __name__ == "__main__":
    hidden = 256
    key = jax.random.PRNGKey(0)
    k1, k2, k3 = jax.random.split(key, 3)

    norm = RMSNorm(hidden, eps=1e-6)

    # 3-D input with a row count that is NOT a multiple of 8 (2*7 = 14 rows)
    # -> exercises flattening + the partial tail-block path.
    x = jax.random.normal(k1, (2, 7, hidden), dtype=jnp.float32)
    residual = jax.random.normal(k2, (2, 7, hidden), dtype=jnp.float32)

    # compute references first (residual may be aliased into residual_out)
    ref1 = _ref_rms(x, norm.weight, norm.eps)
    ref2, ref_res = _ref_add_rms(x, residual, norm.weight, norm.eps)

    # path 1: plain RMSNorm
    out1 = norm(x)
    jax.block_until_ready(out1)
    assert out1.shape == x.shape
    assert jnp.allclose(out1, ref1, atol=1e-5, rtol=1e-5)

    # path 2: fused residual-add + RMSNorm
    out2, res_out = norm(x, residual)
    jax.block_until_ready((out2, res_out))
    assert jnp.allclose(out2, ref2, atol=1e-5, rtol=1e-5)
    assert jnp.allclose(res_out, ref_res, atol=1e-5, rtol=1e-5)

    # path 3: bf16 input (weight stays fp32, output bf16 like the HF module)
    xb = jax.random.normal(k3, (8, hidden), dtype=jnp.float32).astype(jnp.bfloat16)
    refb = _ref_rms(xb, norm.weight, norm.eps)
    outb = norm(xb)
    jax.block_until_ready(outb)
    assert jnp.allclose(
        outb.astype(jnp.float32), refb.astype(jnp.float32), atol=2e-2, rtol=2e-2
    )

    print("KERNEL_OK")
</pallas_src>

<mosaic_0001>
module attributes {stable_mosaic.version = 11 : i64} {
  func.func @_rms_kernel(%arg0: i32, %arg1: memref<8x256xf32, #tpu.memory_space<vmem>>, %arg2: memref<1x256xf32, #tpu.memory_space<vmem>>, %arg3: memref<8x256xf32, #tpu.memory_space<vmem>>) attributes {dimension_semantics = [#tpu.dimension_semantics<parallel>], iteration_bounds = array<i64: 2>, scalar_prefetch = 0 : i64, scratch_operands = 0 : i64, tpu.core_type = #tpu.core_type<tc>, window_params = [{transform_indices = @transform_0, window_bounds = array<i64: 8, 256>}, {pipeline_mode = #tpu.pipeline_mode<synchronous>, transform_indices = @transform_1, window_bounds = array<i64: 1, 256>}, {transform_indices = @transform_2, window_bounds = array<i64: 8, 256>}]} {
    %c0 = arith.constant 0 : index
    %c0_0 = arith.constant 0 : index
    %0 = vector.load %arg1[%c0, %c0_0] : memref<8x256xf32, #tpu.memory_space<vmem>>, vector<8x256xf32>
    %1 = arith.mulf %0, %0 : vector<8x256xf32>
    %cst = arith.constant dense<0.000000e+00> : vector<8xf32>
    %2 = vector.multi_reduction <add>, %1, %cst [1] : vector<8x256xf32> to vector<8xf32>
    %3 = vector.shape_cast %2 : vector<8xf32> to vector<8x1xf32>
    %cst_1 = arith.constant 2.560000e+02 : f32
    %4 = vector.broadcast %cst_1 : f32 to vector<8x1xf32>
    %5 = arith.divf %3, %4 : vector<8x1xf32>
    %cst_2 = arith.constant 9.99999997E-7 : f32
    %6 = vector.broadcast %cst_2 : f32 to vector<8x1xf32>
    %7 = arith.addf %5, %6 : vector<8x1xf32>
    %8 = math.rsqrt %7 : vector<8x1xf32>
    %9 = vector.broadcast %8 : vector<8x1xf32> to vector<8x256xf32>
    %10 = arith.mulf %0, %9 : vector<8x256xf32>
    %c0_3 = arith.constant 0 : index
    %c0_4 = arith.constant 0 : index
    %11 = vector.load %arg2[%c0_3, %c0_4] : memref<1x256xf32, #tpu.memory_space<vmem>>, vector<1x256xf32>
    %12 = vector.broadcast %11 : vector<1x256xf32> to vector<8x256xf32>
    %13 = arith.mulf %12, %10 : vector<8x256xf32>
    %c0_5 = arith.constant 0 : index
    %c0_6 = arith.constant 0 : index
    %14 = vector.load %arg3[%c0_5, %c0_6] : memref<8x256xf32, #tpu.memory_space<vmem>>, vector<8x256xf32>
    tpu.vector_store %arg3[%c0_5, %c0_6], %13 {strides = array<i32>} : memref<8x256xf32, #tpu.memory_space<vmem>>, vector<8x256xf32>,
    return
  }
  func.func @transform_0(%arg0: i32) -> (i32, i32) {
    %c0_i32 = arith.constant 0 : i32
    %c0_i32_0 = arith.constant 0 : i32
    return %arg0, %c0_i32 : i32, i32
  }
  func.func @transform_1(%arg0: i32) -> (i32, i32) {
    %c0_i32 = arith.constant 0 : i32
    %c0_i32_0 = arith.constant 0 : i32
    %c0_i32_1 = arith.constant 0 : i32
    return %c0_i32, %c0_i32_0 : i32, i32
  }
  func.func @transform_2(%arg0: i32) -> (i32, i32) {
    %c0_i32 = arith.constant 0 : i32
    %c0_i32_0 = arith.constant 0 : i32
    return %arg0, %c0_i32 : i32, i32
  }
}

</mosaic_0001>

<llo_original>
// kernel: tpu_custom_call.1
$region0: #{tpu_custom_call.1}
  #allocation0 [shape = 'u32[]', space=smem, size = 0x4, offset = 0x4, fixed_abs, tag = 'smem constant byte address 0x4 - core index']
  #allocation1 [shape = 'u32[144,128]{1,0:T(1,128)}', space=vmem, size = 0x12000, scoped, tag = 'internal scratch']
  %s0 = inlined_call_operand.hbm [shape: f32[14,256], index: 0, kind: input, shape index: {}]
  %s1 = inlined_call_operand.hbm [shape: f32[1,256], index: 1, kind: input, shape index: {}]
  %s2 = inlined_call_operand.hbm [shape: f32[14,256], index: 2, kind: output, shape index: {}]
  %s3 = sld [smem:[#allocation0]]
  $region49: #{tpu_custom_call.1} parent=0
    _
  %s5 = ssub.s32 1, %s3
  %s6 = scalar_select 0, %s5, %s3
  $region1: #{tpu_custom_call.1} parent=0
    #allocation2 [shape = 'u8[16384]{0}', space=vmem, size = 0x4000, scoped, tag = 'input window, operand 0']
    #allocation3 [shape = 's32[2]{0}', space=sflag, size = 0x8, scoped, tag = 'scoped memory for tpu_custom_call.1']
    #allocation4 [shape = 's32[2]{0}', space=sflag, size = 0x8, scoped, tag = 'scoped memory for tpu_custom_call.1']
    #allocation5 [shape = 'u8[1024]{0}', space=vmem, size = 0x400, scoped, tag = 'input window, operand 1, single buffered']
    #allocation6 [shape = 's32[1]{0}', space=sflag, size = 0x4, scoped, tag = 'scoped memory for tpu_custom_call.1']
    #allocation7 [shape = 'u8[16384]{0}', space=vmem, size = 0x4000, scoped, tag = 'output window, operand 0']
    %7 = vsyncpa [#allocation3], 0
    %s8 = scalar_lea.sflag [#allocation3], 1
    %9 = vsyncpa %s8, 0
    %10 = vsyncpa [#allocation6], 0
    %11 = vsyncpa [#allocation4], 0
    %s12 = scalar_lea.sflag [#allocation4], 1
    %13 = vsyncpa %s12, 0
    loop: start=0, step=1, limit=4
    $region2: #{tpu_custom_call.1} parent=1 // loop_pre_header
      _
    $region3: #{tpu_custom_call.1} parent=1 // loop_header
      %s15 = sphi 0, %s19
      %p16 = scmp.ge.s32.totalorder %s15, 4
      %s25 = sphi 0, %s27
      %s28 = sphi 0, %s25
      %s29 = sphi 0, %s28
      %s45 = sphi 0, %s29
      %s49 = sphi 0, %s49
      %s51 = sphi 0, %s49
      %s52 = sphi 0, %s51
      %s66 = sphi 0, %s52
      %s72 = sphi 0, %s74
      %s75 = sphi 0, %s72
      %s76 = sphi 0, %s75
      %s92 = sphi 0, %s76
    $region4: #{tpu_custom_call.1} parent=1 // loop_header_branch
      %18 = sbr.rel (%p16) target = $region8
    $region5: #{tpu_custom_call.1} parent=1 // loop_body
      %s20 = ssub.s32 %s15, 1
      %s21 = ssub.s32 %s15, 2
      %s22 = sadd.s32 %s15, 1
      %s23 = ssub.s32 %s15, %s22
      %p24 = scmp.eq.s32.totalorder %s23, 0
      %s26 = sadd.s32 %s25, 1
      %s27 = scalar_select %p24, %s25, %s26
      %p30 = pneg %p24
      %p31 = scmp.eq.s32.totalorder %s15, 1
      %p32 = por %p30, %p31
      %p33 = scmp.ne.s32.totalorder %s25, %s28
      %p34 = scmp.eq.s32.totalorder %s15, 0
      %p35 = por %p33, %p34
      %p36 = scmp.ne.s32.totalorder %s25, %s28
      %p37 = scmp.eq.s32.totalorder %s20, 1
      %p38 = por %p36, %p37
      %p39 = scmp.ne.s32.totalorder %s28, %s29
      %p40 = scmp.eq.s32.totalorder %s20, 0
      %p41 = por %p39, %p40
      %p42 = scmp.ne.s32.totalorder %s28, %s29
      %p43 = scmp.eq.s32.totalorder %s21, 1
      %p44 = por %p42, %p43
      %p46 = scmp.ne.s32.totalorder %s29, %s45
      %p47 = scmp.eq.s32.totalorder %s21, 0
      %p48 = por %p46, %p47
      %s50 = sadd.s32 %s49, 1
      %p53 = scmp.eq.s32.totalorder %s15, 1
      %p54 = scmp.ne.s32.totalorder %s49, %s51
      %p55 = scmp.eq.s32.totalorder %s15, 0
      %p56 = por %p54, %p55
      %p57 = scmp.ne.s32.totalorder %s49, %s51
      %p58 = scmp.eq.s32.totalorder %s20, 1
      %p59 = por %p57, %p58
      %p60 = scmp.ne.s32.totalorder %s51, %s52
      %p61 = scmp.eq.s32.totalorder %s20, 0
      %p62 = por %p60, %p61
      %p63 = scmp.ne.s32.totalorder %s51, %s52
      %p64 = scmp.eq.s32.totalorder %s21, 1
      %p65 = por %p63, %p64
      %p67 = scmp.ne.s32.totalorder %s52, %s66
      %p68 = scmp.eq.s32.totalorder %s21, 0
      %p69 = por %p67, %p68
      %s70 = ssub.s32 %s15, %s22
      %p71 = scmp.eq.s32.totalorder %s70, 0
      %s73 = sadd.s32 %s72, 1
      %s74 = scalar_select %p71, %s72, %s73
      %p77 = pneg %p71
      %p78 = scmp.eq.s32.totalorder %s15, 1
      %p79 = por %p77, %p78
      %p80 = scmp.ne.s32.totalorder %s72, %s75
      %p81 = scmp.eq.s32.totalorder %s15, 0
      %p82 = por %p80, %p81
      %p83 = scmp.ne.s32.totalorder %s72, %s75
      %p84 = scmp.eq.s32.totalorder %s20, 1
      %p85 = por %p83, %p84
      %p86 = scmp.ne.s32.totalorder %s75, %s76
      %p87 = scmp.eq.s32.totalorder %s20, 0
      %p88 = por %p86, %p87
      %p89 = scmp.ne.s32.totalorder %s75, %s76
      %p90 = scmp.eq.s32.totalorder %s21, 1
      %p91 = por %p89, %p90
      %p93 = scmp.ne.s32.totalorder %s76, %s92
      %p94 = scmp.eq.s32.totalorder %s21, 0
      %p95 = por %p93, %p94
      %p96 = scmp.le.s32.totalorder 1, %s15
      %p97 = scmp.lt.s32.totalorder %s15, 3
      %p98 = pnand %p96, %p97
      %p99 = pneg %p98
      // Predicated region
      $region9: #{tpu_custom_call.1} parent=5 // pred_check
        _
      $region10: #{tpu_custom_call.1} parent=5 // pred_check_branch
        %101 = sbr.rel (%p98) target = $region12
      $region11: #{tpu_custom_call.1} parent=5 // pred_region
        %s102 = ssub.s32 %s15, 1
        // Predicated region
        $region13: #{tpu_custom_call.1} parent=11 // pred_check
          %p103 = pneg %p62
        $region14: #{tpu_custom_call.1} parent=11 // pred_check_branch
          %105 = sbr.rel (%p103) target = $region16
        $region15: #{tpu_custom_call.1} parent=11 // pred_region
          %s107 = ssub.s32 32, 32
          %108 = vsyncadd [#allocation6], %s107
          %s110 = sshll.u32 [#allocation5], 4
          %s111 = int_to_ptr.vmem [resolvable:$true] %s110
          %113 = dma.hbm_to_vmem [thread:$0]  %s1, 32, %s111, [#allocation6]
        $region16: #{tpu_custom_call.1} parent=11 // pred_fallthru
          _
      $region12: #{tpu_custom_call.1} parent=5 // pred_fallthru
        _
      %p114 = scmp.lt.s32.totalorder %s15, 2
      // Predicated region
      $region17: #{tpu_custom_call.1} parent=5 // pred_check
        %p115 = pneg %p114
      $region18: #{tpu_custom_call.1} parent=5 // pred_check_branch
        %117 = sbr.rel (%p115) target = $region20
      $region19: #{tpu_custom_call.1} parent=5 // pred_region
        // Predicated region
        $region21: #{tpu_custom_call.1} parent=19 // pred_check
          %p118 = pneg %p35
        $region22: #{tpu_custom_call.1} parent=19 // pred_check_branch
          %120 = sbr.rel (%p118) target = $region24
        $region23: #{tpu_custom_call.1} parent=19 // pred_region
          %s121 = sand.u32 %s25, 1
          %s122 = scalar_lea.sflag [#allocation3], %s121
          %s123 = sand.u32 %s25, 1
          %s124 = smul.addr %s123, 16
          %s125 = scalar_lea.vmem [#allocation2], %s124
          %s127 = ssub.s32 256, 256
          %128 = vsyncadd %s122, %s127
          %s129 = smul.addr %s15, 2
          %s130 = smul.addr %s129, 128
          %s131 = scalar_lea.hbm %s0, %s130
          %s133 = sshll.u32 %s125, 4
          %s134 = int_to_ptr.vmem [resolvable:$true] %s133
          %136 = dma.hbm_to_vmem [thread:$0]  %s131, 256, %s134, %s122
        $region24: #{tpu_custom_call.1} parent=19 // pred_fallthru
          _
      $region20: #{tpu_custom_call.1} parent=5 // pred_fallthru
        _
      %p137 = scmp.le.s32.totalorder 1, %s15
      %p138 = scmp.lt.s32.totalorder %s15, 3
      %p139 = pnand %p137, %p138
      %p140 = pneg %p139
      // Predicated region
      $region25: #{tpu_custom_call.1} parent=5 // pred_check
        _
      $region26: #{tpu_custom_call.1} parent=5 // pred_check_branch
        %142 = sbr.rel (%p139) target = $region28
      $region27: #{tpu_custom_call.1} parent=5 // pred_region
        %s143 = ssub.s32 %s15, 1
        %s144 = sand.u32 %s28, 1
        %s145 = scalar_lea.sflag [#allocation3], %s144
        %s146 = sand.u32 %s28, 1
        %s147 = smul.addr %s146, 16
        %s148 = scalar_lea.vmem [#allocation2], %s147
        // Predicated region
        $region29: #{tpu_custom_call.1} parent=27 // pred_check
          %p149 = pneg %p41
        $region30: #{tpu_custom_call.1} parent=27 // pred_check_branch
          %151 = sbr.rel (%p149) target = $region32
        $region31: #{tpu_custom_call.1} parent=27 // pred_region
          %152 = dma.done %s145, 256
        $region32: #{tpu_custom_call.1} parent=27 // pred_fallthru
          _
        // Predicated region
        $region33: #{tpu_custom_call.1} parent=27 // pred_check
          %p153 = pneg %p62
        $region34: #{tpu_custom_call.1} parent=27 // pred_check_branch
          %155 = sbr.rel (%p153) target = $region36
        $region35: #{tpu_custom_call.1} parent=27 // pred_region
          %156 = dma.done [#allocation6], 32
        $region36: #{tpu_custom_call.1} parent=27 // pred_fallthru
          _
        %s157 = sand.u32 %s28, 1
        %s158 = scalar_lea.sflag [#allocation3], %s157
        %s159 = sand.u32 %s28, 1
        %s160 = smul.addr %s159, 16
        %s161 = scalar_lea.vmem [#allocation2], %s160
        %p162 = pneg %p41
        %p163 = pneg %p38
        %p164 = pneg %p62
        %p165 = pneg %p59
        %p166 = pneg %p88
        %p167 = pneg %p85
        %s168 = sand.u32 %s75, 1
        %s169 = scalar_lea.sflag [#allocation4], %s168
        %s170 = sand.u32 %s75, 1
        %s171 = smul.addr %s170, 16
        %s172 = scalar_lea.vmem [#allocation7], %s171
        %v173 = vld [vmem:[%s148] sm:$0xff]
        %v174 = vld [vmem:[%s148 + $0x8] sm:$0xff]
        %v175 = vmul.f32 %v173, %v173
        %v176 = vmul.f32 %v174, %v174
        %v177 = vadd.f32 %v175, %v176
        %178 = vadd.xlane.f32.xlu0 %v177
        %v179 = vpop.xlane.xlu0 %178
        %v180 = vrcp.pop 256.0
        %v181 = vmul.f32 %v179, %v180
        %v182 = vadd.f32 %v181, 1e-06
        %v183 = vrsqrt.pop %v182
        %v184 = vmul.f32 %v173, %v183
        %v185 = vmul.f32 %v174, %v183
        %v186 = vld [vmem:[#allocation5] sm:$0x3]
        %v188 = vlaneseq
        %v189 = vshrl.u32 %v188, 7
        %v190 = vsub.s32 0, %v189
        %v191 = vrot.slane %v186, %v190
        %v192 = vlaneseq
        %v193 = vshrl.u32 %v192, 7
        %v194 = vsub.s32 1, %v193
        %v195 = vrot.slane %v186, %v194
        %v198 = vmul.f32 %v191, %v184
        %v199 = vmul.f32 %v195, %v185
        %200 = vst [vmem:[%s172] sm:$0xff] %v198
        %201 = vst [vmem:[%s172 + $0x8] sm:$0xff] %v199
        %s202 = sand.u32 %s75, 1
        %s203 = scalar_lea.sflag [#allocation4], %s202
        %s204 = sand.u32 %s75, 1
        %s205 = smul.addr %s204, 16
        %s206 = scalar_lea.vmem [#allocation7], %s205
        // Predicated region
        $region37: #{tpu_custom_call.1} parent=27 // pred_check
          %p207 = pneg %p85
        $region38: #{tpu_custom_call.1} parent=27 // pred_check_branch
          %209 = sbr.rel (%p207) target = $region40
        $region39: #{tpu_custom_call.1} parent=27 // pred_region
          %s211 = ssub.s32 256, 256
          %212 = vsyncadd %s203, %s211
          %s213 = smul.addr %s20, 2
          %s214 = smul.addr %s213, 128
          %s215 = scalar_lea.hbm %s2, %s214
          %s217 = sshll.u32 %s206, 4
          %s218 = int_to_ptr.vmem [resolvable:$true] %s217
          %220 = dma.vmem_to_hbm [thread:$0]  %s218, 256, %s215, %s203
        $region40: #{tpu_custom_call.1} parent=27 // pred_fallthru
          _
      $region28: #{tpu_custom_call.1} parent=5 // pred_fallthru
        _
      %p221 = scmp.le.s32.totalorder 2, %s15
      // Predicated region
      $region41: #{tpu_custom_call.1} parent=5 // pred_check
        %p222 = pneg %p221
      $region42: #{tpu_custom_call.1} parent=5 // pred_check_branch
        %224 = sbr.rel (%p222) target = $region44
      $region43: #{tpu_custom_call.1} parent=5 // pred_region
        %s225 = ssub.s32 %s15, 2
        // Predicated region
        $region45: #{tpu_custom_call.1} parent=43 // pred_check
          %p226 = pneg %p91
        $region46: #{tpu_custom_call.1} parent=43 // pred_check_branch
          %228 = sbr.rel (%p226) target = $region48
        $region47: #{tpu_custom_call.1} parent=43 // pred_region
          %s229 = sand.u32 %s76, 1
          %s230 = scalar_lea.sflag [#allocation4], %s229
          %s231 = sand.u32 %s76, 1
          %s232 = smul.addr %s231, 16
          %s233 = scalar_lea.vmem [#allocation7], %s232
          %234 = dma.done %s230, 256
        $region48: #{tpu_custom_call.1} parent=43 // pred_fallthru
          _
      $region44: #{tpu_custom_call.1} parent=5 // pred_fallthru
        _
    $region6: #{tpu_custom_call.1} parent=1 // loop_footer
      %s19 = sadd.s32 1, %s15
    $region7: #{tpu_custom_call.1} parent=1 // loop_footer_branch
      %14 = sbr.rel target = $region3
    $region8: #{tpu_custom_call.1} parent=1 // loop_exit
      _
    %235 = vsyncpa [#allocation3], 1
    %s236 = scalar_lea.sflag [#allocation3], 1
    %237 = vsyncpa %s236, 1
    %238 = vsyncpa [#allocation6], 1
    %239 = vsyncpa [#allocation4], 1
    %s240 = scalar_lea.sflag [#allocation4], 1
    %241 = vsyncpa %s240, 1

</llo_original>
